<compile_context>
chip_gen: v7x
topology: tpu7x:2x2x1
jax: 0.10.0
libtpu: 0.0.40
codegen_flags: <defaults>
</compile_context>

<pallas_src>
import jax
import jax.numpy as jnp
from jax.experimental import pallas as pl
from jax.experimental.pallas import tpu as pltpu

IN_FEATURES = 17
H1 = 64
H2 = 32
OUT_FEATURES = 1

# Default batch tile. With lane padding a (TILE_B, 17) bf16 x-tile is laid out
# as (TILE_B, 128) -> ~1 MiB, f32 activations ~2 MiB each, (TILE_B, 1) f32
# output tile ~2 MiB; x/out double-buffered. Total ~12 MiB, fits all gens.
DEFAULT_TILE_B = 4096


def mlp_kernel(x_ref, w1_ref, b1_ref, w2_ref, b2_ref, w3t_ref, b3_ref, o_ref):
    # x/w1 are bf16 -> MXU bf16 matmul, f32 accumulation.
    x = x_ref[...]
    h1 = jnp.dot(x, w1_ref[...], preferred_element_type=jnp.float32) + b1_ref[...]
    h1 = jnp.maximum(h1, 0.0)
    # Layers 2/3 are tiny; keep them f32 (activations stay f32 in-kernel).
    h2 = jnp.dot(h1, w2_ref[...], preferred_element_type=jnp.float32) + b2_ref[...]
    h2 = jnp.maximum(h2, 0.0)
    # Last layer (32 -> 1): broadcast-multiply + lane reduce on VPU/XLU instead
    # of a third, nearly empty MXU matmul.
    out = jnp.sum(h2 * w3t_ref[...], axis=-1, keepdims=True) + b3_ref[...]
    o_ref[...] = out.astype(o_ref.dtype)


def neural_network_forward(x, params, tile_b=DEFAULT_TILE_B):
    """x: [batch, *] (flattened to [batch, 17]); returns logits [batch, 1]."""
    b = x.shape[0]
    x2d = x.reshape(b, -1)  # nn.Flatten()
    assert x2d.shape[1] == IN_FEATURES, (
        f"expected {IN_FEATURES} input features, got {x2d.shape[1]}")
    w1, b1, w2, b2, w3, b3 = params

    # Choose a tile: at most `tile_b`, at least 8, multiple of 8, and don't
    # over-pad tiny batches.
    tile_b = int(min(tile_b, max(8, pl.cdiv(b, 8) * 8)))
    b_pad = int(pl.cdiv(b, tile_b)) * tile_b
    if b_pad != b:
        x2d = jnp.pad(x2d, ((0, b_pad - b), (0, 0)))

    # bf16 for the large operand (x) and its matching weight; f32 accumulate.
    x_in = x2d.astype(jnp.bfloat16)
    w1_in = w1.astype(jnp.bfloat16)
    b1_in = b1.astype(jnp.float32)
    w2_in = w2.astype(jnp.float32)
    b2_in = b2.astype(jnp.float32)
    w3t_in = w3.T.astype(jnp.float32)  # (1, 32) for broadcast-multiply path
    b3_in = b3.astype(jnp.float32)

    grid = (b_pad // tile_b,)
    out = pl.pallas_call(
        mlp_kernel,
        out_shape=jax.ShapeDtypeStruct((b_pad, OUT_FEATURES), jnp.float32),
        grid=grid,
        in_specs=[
            pl.BlockSpec((tile_b, IN_FEATURES), lambda i: (i, 0)),   # x tile
            pl.BlockSpec((IN_FEATURES, H1), lambda i: (0, 0)),       # w1
            pl.BlockSpec((1, H1), lambda i: (0, 0)),                 # b1
            pl.BlockSpec((H1, H2), lambda i: (0, 0)),                # w2
            pl.BlockSpec((1, H2), lambda i: (0, 0)),                 # b2
            pl.BlockSpec((1, H2), lambda i: (0, 0)),                 # w3^T
            pl.BlockSpec((1, OUT_FEATURES), lambda i: (0, 0)),       # b3
        ],
        out_specs=pl.BlockSpec((tile_b, OUT_FEATURES), lambda i: (i, 0)),
        compiler_params=pltpu.CompilerParams(
            dimension_semantics=("parallel",),
            vmem_limit_bytes=32 * 1024 * 1024,
        ),
    )(x_in, w1_in, b1_in, w2_in, b2_in, w3t_in, b3_in)

    return out[:b] if b_pad != b else out


def init_params(key):
    """Deterministic init mimicking PyTorch's default Linear init
    (uniform(-1/sqrt(fan_in), 1/sqrt(fan_in)))."""
    dims = [(IN_FEATURES, H1), (H1, H2), (H2, OUT_FEATURES)]
    params = []
    keys = jax.random.split(key, 2 * len(dims))
    for i, (fan_in, fan_out) in enumerate(dims):
        bound = 1.0 / (fan_in ** 0.5)
        w = jax.random.uniform(keys[2 * i], (fan_in, fan_out), jnp.float32,
                               minval=-bound, maxval=bound)
        bias = jax.random.uniform(keys[2 * i + 1], (1, fan_out), jnp.float32,
                                  minval=-bound, maxval=bound)
        params.extend([w, bias])
    return tuple(params)


if __name__ == "__main__":
    key = jax.random.PRNGKey(0)
    k_x, k_p = jax.random.split(key)

    batch = 8
    x = jax.random.normal(k_x, (batch, IN_FEATURES), jnp.float32)
    params = init_params(k_p)

    logits = neural_network_forward(x, params)
    jax.block_until_ready(logits)

    # Plain-JAX reference with the same precision choices (bf16 x/W1, f32 acc).
    w1, b1, w2, b2, w3, b3 = params
    ref = jnp.dot(x.astype(jnp.bfloat16), w1.astype(jnp.bfloat16),
                  preferred_element_type=jnp.float32) + b1
    ref = jnp.maximum(ref, 0.0)
    ref = jnp.maximum(jnp.dot(ref, w2, preferred_element_type=jnp.float32) + b2, 0.0)
    ref = jnp.dot(ref, w3, preferred_element_type=jnp.float32) + b3

    assert logits.shape == (batch, OUT_FEATURES)
    assert jnp.allclose(logits, ref, atol=1e-2, rtol=1e-2), (
        f"max err {jnp.max(jnp.abs(logits - ref))}")

    print("KERNEL_OK")
</pallas_src>

<mosaic_0001>
module attributes {stable_mosaic.version = 11 : i64} {
  func.func @mlp_kernel(%arg0: i32, %arg1: memref<8x17xbf16, #tpu.memory_space<vmem>>, %arg2: memref<17x64xbf16, #tpu.memory_space<vmem>>, %arg3: memref<1x64xf32, #tpu.memory_space<vmem>>, %arg4: memref<64x32xf32, #tpu.memory_space<vmem>>, %arg5: memref<1x32xf32, #tpu.memory_space<vmem>>, %arg6: memref<1x32xf32, #tpu.memory_space<vmem>>, %arg7: memref<1x1xf32, #tpu.memory_space<vmem>>, %arg8: memref<8x1xf32, #tpu.memory_space<vmem>>) attributes {dimension_semantics = [#tpu.dimension_semantics<parallel>], iteration_bounds = array<i64: 1>, scalar_prefetch = 0 : i64, scratch_operands = 0 : i64, tpu.core_type = #tpu.core_type<tc>, window_params = [{transform_indices = @transform_0, window_bounds = array<i64: 8, 17>}, {pipeline_mode = #tpu.pipeline_mode<synchronous>, transform_indices = @transform_1, window_bounds = array<i64: 17, 64>}, {pipeline_mode = #tpu.pipeline_mode<synchronous>, transform_indices = @transform_2, window_bounds = array<i64: 1, 64>}, {pipeline_mode = #tpu.pipeline_mode<synchronous>, transform_indices = @transform_3, window_bounds = array<i64: 64, 32>}, {pipeline_mode = #tpu.pipeline_mode<synchronous>, transform_indices = @transform_4, window_bounds = array<i64: 1, 32>}, {pipeline_mode = #tpu.pipeline_mode<synchronous>, transform_indices = @transform_5, window_bounds = array<i64: 1, 32>}, {pipeline_mode = #tpu.pipeline_mode<synchronous>, transform_indices = @transform_6, window_bounds = array<i64: 1, 1>}, {transform_indices = @transform_7, window_bounds = array<i64: 8, 1>}]} {
    %c0 = arith.constant 0 : index
    %c0_0 = arith.constant 0 : index
    %0 = vector.load %arg1[%c0, %c0_0] : memref<8x17xbf16, #tpu.memory_space<vmem>>, vector<8x17xbf16>
    %c0_1 = arith.constant 0 : index
    %c0_2 = arith.constant 0 : index
    %1 = vector.load %arg2[%c0_1, %c0_2] : memref<17x64xbf16, #tpu.memory_space<vmem>>, vector<17x64xbf16>
    %cst = arith.constant dense<0.000000e+00> : vector<8x64xf32>
    %2 = tpu.matmul %0, %1, %cst {dimension_numbers = #tpu.dot_dimension_numbers<[1], [0], [0], [1], [0, 0, 1, 1], [], []>} : vector<8x17xbf16>, vector<17x64xbf16>, vector<8x64xf32> -> vector<8x64xf32>
    %c0_3 = arith.constant 0 : index
    %c0_4 = arith.constant 0 : index
    %3 = vector.load %arg3[%c0_3, %c0_4] : memref<1x64xf32, #tpu.memory_space<vmem>>, vector<1x64xf32>
    %4 = vector.broadcast %3 : vector<1x64xf32> to vector<8x64xf32>
    %5 = arith.addf %2, %4 : vector<8x64xf32>
    %cst_5 = arith.constant 0.000000e+00 : f32
    %6 = vector.broadcast %cst_5 : f32 to vector<8x64xf32>
    %7 = arith.maximumf %5, %6 : vector<8x64xf32>
    %c0_6 = arith.constant 0 : index
    %c0_7 = arith.constant 0 : index
    %8 = vector.load %arg4[%c0_6, %c0_7] : memref<64x32xf32, #tpu.memory_space<vmem>>, vector<64x32xf32>
    %cst_8 = arith.constant dense<0.000000e+00> : vector<8x32xf32>
    %9 = tpu.matmul %7, %8, %cst_8 {dimension_numbers = #tpu.dot_dimension_numbers<[1], [0], [0], [1], [0, 0, 1, 1], [], []>} : vector<8x64xf32>, vector<64x32xf32>, vector<8x32xf32> -> vector<8x32xf32>
    %c0_9 = arith.constant 0 : index
    %c0_10 = arith.constant 0 : index
    %10 = vector.load %arg5[%c0_9, %c0_10] : memref<1x32xf32, #tpu.memory_space<vmem>>, vector<1x32xf32>
    %11 = vector.broadcast %10 : vector<1x32xf32> to vector<8x32xf32>
    %12 = arith.addf %9, %11 : vector<8x32xf32>
    %cst_11 = arith.constant 0.000000e+00 : f32
    %13 = vector.broadcast %cst_11 : f32 to vector<8x32xf32>
    %14 = arith.maximumf %12, %13 : vector<8x32xf32>
    %c0_12 = arith.constant 0 : index
    %c0_13 = arith.constant 0 : index
    %15 = vector.load %arg6[%c0_12, %c0_13] : memref<1x32xf32, #tpu.memory_space<vmem>>, vector<1x32xf32>
    %16 = vector.broadcast %15 : vector<1x32xf32> to vector<8x32xf32>
    %17 = arith.mulf %14, %16 : vector<8x32xf32>
    %cst_14 = arith.constant dense<0.000000e+00> : vector<8xf32>
    %18 = vector.multi_reduction <add>, %17, %cst_14 [1] : vector<8x32xf32> to vector<8xf32>
    %19 = vector.shape_cast %18 : vector<8xf32> to vector<8x1xf32>
    %c0_15 = arith.constant 0 : index
    %c0_16 = arith.constant 0 : index
    %20 = vector.load %arg7[%c0_15, %c0_16] : memref<1x1xf32, #tpu.memory_space<vmem>>, vector<1x1xf32>
    %21 = vector.broadcast %20 : vector<1x1xf32> to vector<8x1xf32>
    %22 = arith.addf %19, %21 : vector<8x1xf32>
    %c0_17 = arith.constant 0 : index
    %c0_18 = arith.constant 0 : index
    %23 = vector.load %arg8[%c0_17, %c0_18] : memref<8x1xf32, #tpu.memory_space<vmem>>, vector<8x1xf32>
    tpu.vector_store %arg8[%c0_17, %c0_18], %22 {strides = array<i32>} : memref<8x1xf32, #tpu.memory_space<vmem>>, vector<8x1xf32>,
    return
  }
  func.func @transform_0(%arg0: i32) -> (i32, i32) {
    %c0_i32 = arith.constant 0 : i32
    %c0_i32_0 = arith.constant 0 : i32
    return %arg0, %c0_i32 : i32, i32
  }
  func.func @transform_1(%arg0: i32) -> (i32, i32) {
    %c0_i32 = arith.constant 0 : i32
    %c0_i32_0 = arith.constant 0 : i32
    %c0_i32_1 = arith.constant 0 : i32
    return %c0_i32, %c0_i32_0 : i32, i32
  }
  func.func @transform_2(%arg0: i32) -> (i32, i32) {
    %c0_i32 = arith.constant 0 : i32
    %c0_i32_0 = arith.constant 0 : i32
    %c0_i32_1 = arith.constant 0 : i32
    return %c0_i32, %c0_i32_0 : i32, i32
  }
  func.func @transform_3(%arg0: i32) -> (i32, i32) {
    %c0_i32 = arith.constant 0 : i32
    %c0_i32_0 = arith.constant 0 : i32
    %c0_i32_1 = arith.constant 0 : i32
    return %c0_i32, %c0_i32_0 : i32, i32
  }
  func.func @transform_4(%arg0: i32) -> (i32, i32) {
    %c0_i32 = arith.constant 0 : i32
    %c0_i32_0 = arith.constant 0 : i32
    %c0_i32_1 = arith.constant 0 : i32
    return %c0_i32, %c0_i32_0 : i32, i32
  }
  func.func @transform_5(%arg0: i32) -> (i32, i32) {
    %c0_i32 = arith.constant 0 : i32
    %c0_i32_0 = arith.constant 0 : i32
    %c0_i32_1 = arith.constant 0 : i32
    return %c0_i32, %c0_i32_0 : i32, i32
  }
  func.func @transform_6(%arg0: i32) -> (i32, i32) {
    %c0_i32 = arith.constant 0 : i32
    %c0_i32_0 = arith.constant 0 : i32
    %c0_i32_1 = arith.constant 0 : i32
    return %c0_i32, %c0_i32_0 : i32, i32
  }
  func.func @transform_7(%arg0: i32) -> (i32, i32) {
    %c0_i32 = arith.constant 0 : i32
    %c0_i32_0 = arith.constant 0 : i32
    return %arg0, %c0_i32 : i32, i32
  }
}

</mosaic_0001>

<llo_original>
// kernel: tpu_custom_call.1
$region0: #{tpu_custom_call.1}
  #allocation0 [shape = 'u32[]', space=smem, size = 0x4, offset = 0x4, fixed_abs, tag = 'smem constant byte address 0x4 - core index']
  #allocation1 [shape = 'u32[144,128]{1,0:T(1,128)}', space=vmem, size = 0x12000, scoped, tag = 'internal scratch']
  #allocation2 [shape = 'f32[1,1]{1,0:T(1,128)S(1)}', space=vmem, size = 0x200, scoped, tag = 'scoped memory for tpu_custom_call.1']
  %s0 = inlined_call_operand.vmem [shape: bf16[8,17], index: 0, kind: input, shape index: {}]
  %s1 = inlined_call_operand.vmem [shape: bf16[17,64], index: 1, kind: input, shape index: {}]
  %s2 = inlined_call_operand.vmem [shape: f32[1,64], index: 2, kind: input, shape index: {}]
  %s3 = inlined_call_operand.vmem [shape: f32[64,32], index: 3, kind: input, shape index: {}]
  %s4 = inlined_call_operand.vmem [shape: f32[1,32], index: 4, kind: input, shape index: {}]
  %s5 = inlined_call_operand.vmem [shape: f32[1,32], index: 5, kind: input, shape index: {}]
  %s6 = inlined_call_operand.<no memory space> [shape: f32[1,1], index: 6, kind: input, shape index: {}]
  %s7 = inlined_call_operand.vmem [shape: f32[8,1], index: 7, kind: output, shape index: {}]
  %s8 = sld [smem:[#allocation0]]
  $region38: #{tpu_custom_call.1} parent=0
    _
  %s10 = ssub.s32 1, %s8
  %s11 = scalar_select 0, %s10, %s8
  %v12 = vstv %s6
  %13 = vst [vmem:[#allocation2] sm:$0x1] %v12
  // Predicated region
  $region2: #{tpu_custom_call.1} parent=0 // pred_check
    _
  $region3: #{tpu_custom_call.1} parent=0 // pred_check_branch
    %15 = sbr.rel (0) target = $region5
  $region4: #{tpu_custom_call.1} parent=0 // pred_region
    _
  $region5: #{tpu_custom_call.1} parent=0 // pred_fallthru
    _
  // Predicated region
  $region6: #{tpu_custom_call.1} parent=0 // pred_check
    _
  $region7: #{tpu_custom_call.1} parent=0 // pred_check_branch
    %17 = sbr.rel (0) target = $region9
  $region8: #{tpu_custom_call.1} parent=0 // pred_region
    _
  $region9: #{tpu_custom_call.1} parent=0 // pred_fallthru
    _
  // Predicated region
  $region10: #{tpu_custom_call.1} parent=0 // pred_check
    _
  $region11: #{tpu_custom_call.1} parent=0 // pred_check_branch
    %19 = sbr.rel (0) target = $region13
  $region12: #{tpu_custom_call.1} parent=0 // pred_region
    _
  $region13: #{tpu_custom_call.1} parent=0 // pred_fallthru
    _
  // Predicated region
  $region14: #{tpu_custom_call.1} parent=0 // pred_check
    _
  $region15: #{tpu_custom_call.1} parent=0 // pred_check_branch
    %21 = sbr.rel (0) target = $region17
  $region16: #{tpu_custom_call.1} parent=0 // pred_region
    _
  $region17: #{tpu_custom_call.1} parent=0 // pred_fallthru
    _
  // Predicated region
  $region18: #{tpu_custom_call.1} parent=0 // pred_check
    _
  $region19: #{tpu_custom_call.1} parent=0 // pred_check_branch
    %23 = sbr.rel (0) target = $region21
  $region20: #{tpu_custom_call.1} parent=0 // pred_region
    _
  $region21: #{tpu_custom_call.1} parent=0 // pred_fallthru
    _
  // Predicated region
  $region22: #{tpu_custom_call.1} parent=0 // pred_check
    _
  $region23: #{tpu_custom_call.1} parent=0 // pred_check_branch
    %25 = sbr.rel (0) target = $region25
  $region24: #{tpu_custom_call.1} parent=0 // pred_region
    _
  $region25: #{tpu_custom_call.1} parent=0 // pred_fallthru
    _
  // Predicated region
  $region26: #{tpu_custom_call.1} parent=0 // pred_check
    _
  $region27: #{tpu_custom_call.1} parent=0 // pred_check_branch
    %27 = sbr.rel (0) target = $region29
  $region28: #{tpu_custom_call.1} parent=0 // pred_region
    _
  $region29: #{tpu_custom_call.1} parent=0 // pred_fallthru
    _
  %v29 = vld [vmem:[%s0] sm:$0xf]
  %v30 = vld [vmem:[%s1] sm:$0xf]
  %v31 = vld [vmem:[%s1 + $0x4] sm:$0xf]
  %v32 = vld [vmem:[%s1 + $0x8] sm:$0x1]
  %v33 = vld [vmem:[%s2] sm:$0x1]
  %v35 = vlaneseq
  %v36 = vshrl.u32 %v35, 7
  %v37 = vsub.s32 0, %v36
  %v38 = vrot.slane %v33, %v37
  %v43 = vunpack.c.l.b16 %v30
  %v44 = vunpack.c.l.b16 %v31
  %v45 = vunpack.c.l.b16 %v32
  %v46 = vpack.c.b16 %v44, %v43
  %v47 = vpack.c.b16 %v45, %v45
  %vm49 = vcmask 138240
  %v51 = vsel %vm49, %v29, 0
  %vm53 = vcmask 1040384
  %v54 = vsel 0, 4294967295, 65535
  %v55 = vsel %vm53, %v54, 0
  %v57 = vand.u32 %v47, %v55
  %59 = vmatprep.subr.bf16.mxu0 0
  %60 = vmatpush1.bf16.msra.mxu0 %v46
  %61 = vmatprep.subr.bf16.mxu0 0
  %62 = vmatpush1.bf16.msra.mxu0 %v57
  %63 = vmatprep.subr.bf16.mxu0 0
  %64 = vmatpush1.bf16.msra.mxu0 0
  %65 = vmatprep.subr.bf16.mxu0 0
  %66 = vmatpush1.bf16.msra.mxu0 0
  %67 = vmatprep.subr.bf16.mxu0 0
  %68 = vmatpush1.bf16.msra.mxu0 0
  %69 = vmatprep.subr.bf16.mxu0 0
  %70 = vmatpush1.bf16.msra.mxu0 0
  %71 = vmatprep.subr.bf16.mxu0 0
  %72 = vmatpush1.bf16.msra.mxu0 0
  %73 = vmatprep.subr.bf16.mxu0 0
  %74 = vmatpush1.bf16.msra.mxu0 0
  %75 = vmatprep.subr.bf16.mxu0 0
  %76 = vmatpush1.bf16.msra.mxu0 0
  %77 = vmatprep.subr.bf16.mxu0 0
  %78 = vmatpush1.bf16.msra.mxu0 0
  %79 = vmatprep.subr.bf16.mxu0 0
  %80 = vmatpush1.bf16.msra.mxu0 0
  %81 = vmatprep.subr.bf16.mxu0 0
  %82 = vmatpush1.bf16.msra.mxu0 0
  %83 = vmatprep.subr.bf16.mxu0 0
  %84 = vmatpush1.bf16.msra.mxu0 0
  %85 = vmatprep.subr.bf16.mxu0 0
  %86 = vmatpush1.bf16.msra.mxu0 0
  %87 = vmatprep.subr.bf16.mxu0 0
  %88 = vmatpush1.bf16.msra.mxu0 0
  %89 = vmatprep.subr.bf16.mxu0 0
  %90 = vmatpush1.bf16.msra.mxu0 0
  %91 = vmatprep.mubr.bf16.mxu0 0
  %92 = vmatmul.mubr.bf16.gmra.mrb[0].mxu0 %v51
  %v93 = vpop.f32.mrb[0].mxu0
  %v94 = vadd.f32 %v38, %v93
  %v95 = vpop.f32.mrb[0].mxu0
  %v96 = vpop.f32.mrb[0].mxu0
  %v97 = vpop.f32.mrb[0].mxu0
  %98 = vdwg.mxu0
  %v99 = vmax.f32 %v94, 0.0
  %v100 = vld [vmem:[%s3] sm:$0xff]
  %v101 = vld [vmem:[%s3 + $0x8] sm:$0xff]
  %v102 = vld [vmem:[%s3 + $0x10] sm:$0xff]
  %v103 = vld [vmem:[%s3 + $0x18] sm:$0xff]
  %v104 = vld [vmem:[%s3 + $0x20] sm:$0xff]
  %v105 = vld [vmem:[%s3 + $0x28] sm:$0xff]
  %v106 = vld [vmem:[%s3 + $0x30] sm:$0xff]
  %v107 = vld [vmem:[%s3 + $0x38] sm:$0xff]
  %v108 = vld [vmem:[%s4] sm:$0x1]
  %v110 = vlaneseq
  %v111 = vshrl.u32 %v110, 7
  %v112 = vsub.s32 0, %v111
  %v113 = vrot.slane %v108, %v112
  %vm115 = vcmask 523264
  %v117 = vsel %vm115, %v99, 0
  %119 = vmatprep.subr.mxu0 0.0
  %120 = vmatpush1.msra.mxu0 %v100
  %121 = vmatprep.subr.mxu0 0.0
  %122 = vmatpush1.msra.mxu0 %v101
  %123 = vmatprep.subr.mxu0 0.0
  %124 = vmatpush1.msra.mxu0 %v102
  %125 = vmatprep.subr.mxu0 0.0
  %126 = vmatpush1.msra.mxu0 %v103
  %127 = vmatprep.subr.mxu0 0.0
  %128 = vmatpush1.msra.mxu0 %v104
  %129 = vmatprep.subr.mxu0 0.0
  %130 = vmatpush1.msra.mxu0 %v105
  %131 = vmatprep.subr.mxu0 0.0
  %132 = vmatpush1.msra.mxu0 %v106
  %133 = vmatprep.subr.mxu0 0.0
  %134 = vmatpush1.msra.mxu0 %v107
  %135 = vmatprep.subr.mxu0 0.0
  %136 = vmatpush1.msra.mxu0 0.0
  %137 = vmatprep.subr.mxu0 0.0
  %138 = vmatpush1.msra.mxu0 0.0
  %139 = vmatprep.subr.mxu0 0.0
  %140 = vmatpush1.msra.mxu0 0.0
  %141 = vmatprep.subr.mxu0 0.0
  %142 = vmatpush1.msra.mxu0 0.0
  %143 = vmatprep.subr.mxu0 0.0
  %144 = vmatpush1.msra.mxu0 0.0
  %145 = vmatprep.subr.mxu0 0.0
  %146 = vmatpush1.msra.mxu0 0.0
  %147 = vmatprep.subr.mxu0 0.0
  %148 = vmatpush1.msra.mxu0 0.0
  %149 = vmatprep.subr.mxu0 0.0
  %150 = vmatpush1.msra.mxu0 0.0
  %151 = vmatprep.subr.mxu0 0.0
  %152 = vmatpush1.msra.mxu0 0.0
  %153 = vmatprep.subr.mxu0 0.0
  %154 = vmatpush1.msra.mxu0 0.0
  %155 = vmatprep.subr.mxu0 0.0
  %156 = vmatpush1.msra.mxu0 0.0
  %157 = vmatprep.subr.mxu0 0.0
  %158 = vmatpush1.msra.mxu0 0.0
  %159 = vmatprep.subr.mxu0 0.0
  %160 = vmatpush1.msra.mxu0 0.0
  %161 = vmatprep.subr.mxu0 0.0
  %162 = vmatpush1.msra.mxu0 0.0
  %163 = vmatprep.subr.mxu0 0.0
  %164 = vmatpush1.msra.mxu0 0.0
  %165 = vmatprep.subr.mxu0 0.0
  %166 = vmatpush1.msra.mxu0 0.0
  %167 = vmatprep.subr.mxu0 0.0
  %168 = vmatpush1.msra.mxu0 0.0
  %169 = vmatprep.subr.mxu0 0.0
  %170 = vmatpush1.msra.mxu0 0.0
  %171 = vmatprep.subr.mxu0 0.0
  %172 = vmatpush1.msra.mxu0 0.0
  %173 = vmatprep.subr.mxu0 0.0
  %174 = vmatpush1.msra.mxu0 0.0
  %175 = vmatprep.subr.mxu0 0.0
  %176 = vmatpush1.msra.mxu0 0.0
  %177 = vmatprep.subr.mxu0 0.0
  %178 = vmatpush1.msra.mxu0 0.0
  %179 = vmatprep.subr.mxu0 0.0
  %180 = vmatpush1.msra.mxu0 0.0
  %181 = vmatprep.subr.mxu0 0.0
  %182 = vmatpush1.msra.mxu0 0.0
  %183 = vmatprep.mubr.f32.mxu0 0.0
  %184 = vmatmul.mubr.f32.gmra.mrb[0].mxu0 %v117
  %v185 = vpop.f32.mrb[0].mxu0
  %v186 = vadd.f32 %v113, %v185
  %v187 = vpop.f32.mrb[0].mxu0
  %188 = vdwg.mxu0
  %v189 = vmax.f32 %v186, 0.0
  %v190 = vld [vmem:[%s5] sm:$0x1]
  %v192 = vlaneseq
  %v193 = vshrl.u32 %v192, 7
  %v194 = vsub.s32 0, %v193
  %v195 = vrot.slane %v190, %v194
  %v197 = vmul.f32 %v189, %v195
  %vm198 = vcmask 261120
  %v199 = vsel %vm198, %v197, 0.0
  %200 = vadd.xlane.f32.xlu0 %v199
  %v201 = vpop.xlane.xlu0 %200
  %v202 = vld [vmem:[#allocation2] sm:$0x1]
  %v204 = vlaneseq
  %v205 = vshrl.u32 %v204, 7
  %v206 = vsub.s32 0, %v205
  %v207 = vrot.slane %v202, %v206
  %v209 = vadd.f32 %v201, %v207
  %vm210 = vcmask 7168
  %211 = vst.msk [vmem:[%s7] sm:$0xff] %vm210, %v209
  // Predicated region
  $region30: #{tpu_custom_call.1} parent=0 // pred_check
    _
  $region31: #{tpu_custom_call.1} parent=0 // pred_check_branch
    %213 = sbr.rel (0) target = $region33
  $region32: #{tpu_custom_call.1} parent=0 // pred_region
    _
  $region33: #{tpu_custom_call.1} parent=0 // pred_fallthru
    _
  // Predicated region
  $region34: #{tpu_custom_call.1} parent=0 // pred_check
    _
  $region35: #{tpu_custom_call.1} parent=0 // pred_check_branch
    %215 = sbr.rel (0) target = $region37
  $region36: #{tpu_custom_call.1} parent=0 // pred_region
    _
  $region37: #{tpu_custom_call.1} parent=0 // pred_fallthru
    _

</llo_original>
